<compile_context>
chip_gen: v5e
topology: v5e:2x2
jax: 0.10.0
libtpu: 0.0.40
codegen_flags: <defaults>
</compile_context>

<pallas_src>
import jax
import jax.numpy as jnp
from jax.experimental import pallas as pl
from jax.experimental.pallas import tpu as pltpu

# ---- model hyper-parameters -------------------------------------------------
# (The reference __init__ indexes filter_sizes[0..3], so it needs 4 sizes / 4 counts.)
FILTER_SIZES = (2, 3, 4, 5)
NUM_FILTERS = (16, 16, 16, 16)
NUM_CLASSES = 2
EMBED_DIM = 32
VOCAB_SIZE = 50
MAX_NORM = 5.0

LANE = 128                                    # TPU lane width: pad narrow dims to this
FPB = NUM_FILTERS[0]                          # filters per conv branch
FEAT_REAL = sum(NUM_FILTERS)                  # 64 real pooled features
NUM_TAPS = max(FILTER_SIZES)                  # 5 tap blocks in the stacked conv table
VPAD = ((VOCAB_SIZE + LANE - 1) // LANE) * LANE   # lane-padded vocab (128)

# The pooling-mask formula (kernel_size = 2 + col // FPB) bakes these in:
assert FILTER_SIZES == (2, 3, 4, 5)
assert all(f == FPB for f in NUM_FILTERS)
assert FEAT_REAL <= LANE and NUM_CLASSES <= LANE


def cnn_nlp_kernel(ids_ref, table_ref, bconv_ref, mask_ref, wfc_ref, bfc_ref, out_ref):
    """Fused embed -> conv(k=2..5) -> ReLU -> max-pool -> FC for one batch tile."""
    bt, seq_len = ids_ref.shape
    bl = bt * seq_len                         # flattened (batch, position) rows

    # --- one-hot over the lane-padded vocab (exact in bf16).  Each conv tap is just a
    #     shifted copy of this one-hot along the flattened sequence axis, produced with
    #     cheap static sublane rolls (XLU slot, hidden under the MXU). -----------------
    ids = ids_ref[...]                                               # (bt, L) int32
    v_iota = jax.lax.broadcasted_iota(jnp.int32, (bt, seq_len, VPAD), 2)
    one_hot = (v_iota == ids[:, :, None]).astype(jnp.float32)        # (bt, L, VPAD)
    one_hot = one_hot.reshape(bl, VPAD)                              # free when L % 8 == 0

    taps = [one_hot.astype(jnp.bfloat16)]
    for t in range(1, NUM_TAPS):
        # row r of tap t sees the token at flat position r + t; wrapped rows are
        # l >= L - t and always land outside that branch's valid pooling window.
        taps.append(pltpu.roll(one_hot, shift=bl - t, axis=0).astype(jnp.bfloat16))
    stacked = jnp.concatenate(taps, axis=1)                          # (bl, NUM_TAPS*VPAD) bf16

    # --- embedding gather + all 4 convs in ONE deep-K MXU matmul
    #     (bf16 operands, f32 accumulation). -------------------------------------------
    preact = jnp.dot(stacked, table_ref[...],
                     preferred_element_type=jnp.float32)             # (bl, LANE) f32
    conv = jnp.maximum(preact + bconv_ref[...], 0.0)                 # bias + ReLU

    # --- masked max-over-time pooling: precomputed additive (L, LANE) mask
    #     (0 inside each branch's valid window, -1e30 elsewhere; finite on purpose). ---
    conv3 = conv.reshape(bt, seq_len, LANE)
    pooled = jnp.max(conv3 + mask_ref[...][None, :, :], axis=1)      # (bt, LANE)
    pooled = jnp.maximum(pooled, 0.0)                                # pad lanes -> exactly 0

    # --- padded 128x128 FC (dropout is identity in eval mode). ------------------------
    logits = jnp.dot(pooled.astype(jnp.bfloat16), wfc_ref[...],
                     preferred_element_type=jnp.float32) + bfc_ref[...]
    out_ref[...] = logits.astype(out_ref.dtype)


def _pool_mask(seq_len):
    """(L, LANE) additive pooling mask: 0 where position l is inside branch j's valid
    window l < L - (j+2) + 1, -1e30 elsewhere (and in all pad lanes).  Finite so the
    zero pad columns of the FC weight never multiply an inf."""
    l = jnp.arange(seq_len)[:, None]
    c = jnp.arange(LANE)[None, :]
    l_out = jnp.where(c < FEAT_REAL, seq_len - 1 - c // FPB, 0)
    return jnp.where(l < l_out, 0.0, -1e30).astype(jnp.float32)


def cnn_nlp_forward(input_ids, table, bconv, wfc, bfc):
    """Eval-mode forward: (B, L) int token ids -> (B, NUM_CLASSES) f32 logits."""
    # TODO(synk): training-mode dropout (p=0.5) is identity in eval and is omitted.
    B, L = input_ids.shape
    assert L >= max(FILTER_SIZES), "sequence shorter than the largest conv filter"

    # Batch tiling: sublane-aligned rows per grid step, capped at 256 so intermediates
    # stay well inside v7x's 64 MiB VMEM; for large batches keep the block count even so
    # both v7x TensorCores get work from the "parallel" axis (v5e/v6e just loop).
    b8 = ((B + 7) // 8) * 8
    if b8 <= 256:
        btile, n_blocks = b8, 1
    else:
        n_blocks = 2 * ((b8 + 511) // 512)
        btile = (((b8 + n_blocks - 1) // n_blocks) + 7) // 8 * 8
    b_pad = btile * n_blocks

    ids = input_ids.astype(jnp.int32)
    if b_pad != B:                            # padded rows produce garbage, sliced off below
        ids = jnp.pad(ids, ((0, b_pad - B), (0, 0)))

    mask = _pool_mask(L)

    flops = int(2 * b_pad * L * (NUM_TAPS * VPAD) * LANE + 2 * b_pad * LANE * LANE)
    bytes_accessed = int(4 * b_pad * L + 2 * table.size + 4 * bconv.size + 4 * mask.size
                         + 2 * wfc.size + 4 * bfc.size + 4 * b_pad * LANE)

    out = pl.pallas_call(
        cnn_nlp_kernel,
        out_shape=jax.ShapeDtypeStruct((b_pad, LANE), jnp.float32),
        grid_spec=pltpu.PrefetchScalarGridSpec(
            num_scalar_prefetch=0,
            grid=(n_blocks,),
            in_specs=[
                pl.BlockSpec((btile, L), lambda i: (i, 0)),   # token ids, lane-dense rows
                # Grid-invariant tables/weights: whole-array VMEM residents (< 0.5 MB
                # total, so the default double-buffering of revisited blocks is noise).
                pl.BlockSpec(table.shape, lambda i: (0, 0)),  # stacked conv table (bf16)
                pl.BlockSpec(bconv.shape, lambda i: (0, 0)),  # packed conv bias
                pl.BlockSpec(mask.shape, lambda i: (0, 0)),   # additive pooling mask
                pl.BlockSpec(wfc.shape, lambda i: (0, 0)),    # padded FC weight (bf16)
                pl.BlockSpec(bfc.shape, lambda i: (0, 0)),    # padded FC bias
            ],
            out_specs=pl.BlockSpec((btile, LANE), lambda i: (i, 0)),
        ),
        compiler_params=pltpu.CompilerParams(
            dimension_semantics=("parallel",),
            vmem_limit_bytes=40 * 1024 * 1024),
        cost_estimate=pl.CostEstimate(flops=flops, transcendentals=0,
                                      bytes_accessed=bytes_accessed),
    )(ids, table, bconv, mask, wfc, bfc)
    return out[:B, :NUM_CLASSES]              # drop lane padding (and any batch padding)


def init_params(key):
    """PyTorch-layout params: Conv1d (F, E, k) + (F,), Linear (C, sumF) + (C,), emb (V, E)."""
    keys = jax.random.split(key, 11)
    conv_ws, conv_bs = [], []
    for j, (k, f) in enumerate(zip(FILTER_SIZES, NUM_FILTERS)):
        conv_ws.append(jax.random.normal(keys[2 * j], (f, EMBED_DIM, k), jnp.float32) * 0.1)
        conv_bs.append(jax.random.normal(keys[2 * j + 1], (f,), jnp.float32) * 0.1)
    fc_w = jax.random.normal(keys[8], (NUM_CLASSES, FEAT_REAL), jnp.float32) * 0.1
    fc_b = jax.random.normal(keys[9], (NUM_CLASSES,), jnp.float32) * 0.1
    emb = jax.random.normal(keys[10], (VOCAB_SIZE, EMBED_DIM), jnp.float32)
    emb = emb.at[0].set(0.0)                  # padding_idx=0
    return conv_ws, conv_bs, fc_w, fc_b, emb


def pack_params(conv_ws, conv_bs, fc_w, fc_b, emb):
    """Hoisted, one-time packing: max_norm renorm + embedding@conv-tap pre-projection,
    stacked into the lane-aligned bf16 table the kernel expects."""
    norm = jnp.linalg.norm(emb, axis=-1, keepdims=True)
    emb_n = jnp.where(norm > MAX_NORM, emb * (MAX_NORM / jnp.maximum(norm, 1e-7)), emb)

    table = jnp.zeros((NUM_TAPS * VPAD, LANE), jnp.float32)
    bconv = jnp.zeros((1, LANE), jnp.float32)
    off = 0
    for k, f, w, b in zip(FILTER_SIZES, NUM_FILTERS, conv_ws, conv_bs):
        for t in range(k):                    # tap t of this branch -> rows [t*VPAD, t*VPAD+V)
            proj = emb_n @ w[:, :, t].T       # (V, f)
            table = table.at[t * VPAD:t * VPAD + VOCAB_SIZE, off:off + f].set(proj)
        bconv = bconv.at[0, off:off + f].set(b)
        off += f
    wfc = jnp.zeros((LANE, LANE), jnp.float32).at[:FEAT_REAL, :NUM_CLASSES].set(fc_w.T)
    bfc = jnp.zeros((1, LANE), jnp.float32).at[0, :NUM_CLASSES].set(fc_b)
    return table.astype(jnp.bfloat16), bconv, wfc.astype(jnp.bfloat16), bfc


def reference_forward(input_ids, conv_ws, conv_bs, fc_w, fc_b, emb):
    """Pure-JAX mirror of the PyTorch forward (eval mode)."""
    x = emb[input_ids].astype(jnp.float32)                        # (B, L, E)
    norm = jnp.linalg.norm(x, axis=-1, keepdims=True)
    x = jnp.where(norm > MAX_NORM, x * (MAX_NORM / jnp.maximum(norm, 1e-7)), x)
    feats = []
    for k, w, b in zip(FILTER_SIZES, conv_ws, conv_bs):
        l_out = x.shape[1] - k + 1
        acc = sum(jnp.einsum("ble,fe->blf", x[:, t:t + l_out, :], w[:, :, t])
                  for t in range(k))
        feats.append(jnp.max(jax.nn.relu(acc + b[None, None, :]), axis=1))
    return jnp.concatenate(feats, axis=-1) @ fc_w.T + fc_b


if __name__ == "__main__":
    key = jax.random.PRNGKey(0)
    pkey, dkey = jax.random.split(key)
    conv_ws, conv_bs, fc_w, fc_b, emb = init_params(pkey)
    table, bconv, wfc, bfc = pack_params(conv_ws, conv_bs, fc_w, fc_b, emb)

    B, L = 2, 16
    input_ids = jax.random.randint(dkey, (B, L), 0, VOCAB_SIZE, dtype=jnp.int32)

    logits = cnn_nlp_forward(input_ids, table, bconv, wfc, bfc)
    logits = jax.block_until_ready(logits)

    ref = reference_forward(input_ids, conv_ws, conv_bs, fc_w, fc_b, emb)
    assert logits.shape == (B, NUM_CLASSES)
    # tolerance covers bf16 MXU operands (f32 accumulation) vs the all-f32 XLA reference
    assert jnp.allclose(logits, ref, atol=3e-2, rtol=3e-2), (logits, ref)
    print("KERNEL_OK")
</pallas_src>

<mosaic_0001>
module attributes {stable_mosaic.version = 11 : i64} {
  func.func @cnn_nlp_kernel(%arg0: i32, %arg1: memref<8x16xi32, #tpu.memory_space<vmem>>, %arg2: memref<640x128xbf16, #tpu.memory_space<vmem>>, %arg3: memref<1x128xf32, #tpu.memory_space<vmem>>, %arg4: memref<16x128xf32, #tpu.memory_space<vmem>>, %arg5: memref<128x128xbf16, #tpu.memory_space<vmem>>, %arg6: memref<1x128xf32, #tpu.memory_space<vmem>>, %arg7: memref<8x128xf32, #tpu.memory_space<vmem>>) attributes {dimension_semantics = [#tpu.dimension_semantics<parallel>], iteration_bounds = array<i64: 1>, scalar_prefetch = 0 : i64, scratch_operands = 0 : i64, tpu.core_type = #tpu.core_type<tc>, window_params = [{transform_indices = @transform_0, window_bounds = array<i64: 8, 16>}, {pipeline_mode = #tpu.pipeline_mode<synchronous>, transform_indices = @transform_1, window_bounds = array<i64: 640, 128>}, {pipeline_mode = #tpu.pipeline_mode<synchronous>, transform_indices = @transform_2, window_bounds = array<i64: 1, 128>}, {pipeline_mode = #tpu.pipeline_mode<synchronous>, transform_indices = @transform_3, window_bounds = array<i64: 16, 128>}, {pipeline_mode = #tpu.pipeline_mode<synchronous>, transform_indices = @transform_4, window_bounds = array<i64: 128, 128>}, {pipeline_mode = #tpu.pipeline_mode<synchronous>, transform_indices = @transform_5, window_bounds = array<i64: 1, 128>}, {transform_indices = @transform_6, window_bounds = array<i64: 8, 128>}]} {
    %c0 = arith.constant 0 : index
    %c0_0 = arith.constant 0 : index
    %0 = vector.load %arg1[%c0, %c0_0] : memref<8x16xi32, #tpu.memory_space<vmem>>, vector<8x16xi32>
    %1 = tpu.iota {dimensions = array<i32: 2>} : vector<8x16x128xi32>
    %2 = vector.shape_cast %0 : vector<8x16xi32> to vector<8x16x1xi32>
    %3 = vector.broadcast %2 : vector<8x16x1xi32> to vector<8x16x128xi32>
    %4 = arith.cmpi eq, %1, %3 : vector<8x16x128xi32>
    %5 = arith.extui %4 : vector<8x16x128xi1> to vector<8x16x128xi32>
    %6 = arith.sitofp %5 : vector<8x16x128xi32> to vector<8x16x128xf32>
    %7 = vector.shape_cast %6 : vector<8x16x128xf32> to vector<128x128xf32>
    %8 = arith.truncf %7 : vector<128x128xf32> to vector<128x128xbf16>
    %c127_i32 = arith.constant 127 : i32
    %9 = tpu.dynamic_rotate %7 by %c127_i32 dim 0 : vector<128x128xf32>, i32 -> vector<128x128xf32>
    %10 = arith.truncf %9 : vector<128x128xf32> to vector<128x128xbf16>
    %c126_i32 = arith.constant 126 : i32
    %11 = tpu.dynamic_rotate %7 by %c126_i32 dim 0 : vector<128x128xf32>, i32 -> vector<128x128xf32>
    %12 = arith.truncf %11 : vector<128x128xf32> to vector<128x128xbf16>
    %c125_i32 = arith.constant 125 : i32
    %13 = tpu.dynamic_rotate %7 by %c125_i32 dim 0 : vector<128x128xf32>, i32 -> vector<128x128xf32>
    %14 = arith.truncf %13 : vector<128x128xf32> to vector<128x128xbf16>
    %c124_i32 = arith.constant 124 : i32
    %15 = tpu.dynamic_rotate %7 by %c124_i32 dim 0 : vector<128x128xf32>, i32 -> vector<128x128xf32>
    %16 = arith.truncf %15 : vector<128x128xf32> to vector<128x128xbf16>
    %17 = tpu.concatenate %8, %10, %12, %14, %16 in 1 : vector<128x128xbf16>, vector<128x128xbf16>, vector<128x128xbf16>, vector<128x128xbf16>, vector<128x128xbf16> -> vector<128x640xbf16>
    %c0_1 = arith.constant 0 : index
    %c0_2 = arith.constant 0 : index
    %18 = vector.load %arg2[%c0_1, %c0_2] : memref<640x128xbf16, #tpu.memory_space<vmem>>, vector<640x128xbf16>
    %cst = arith.constant dense<0.000000e+00> : vector<128x128xf32>
    %19 = tpu.matmul %17, %18, %cst {dimension_numbers = #tpu.dot_dimension_numbers<[1], [0], [0], [1], [0, 0, 1, 1], [], []>} : vector<128x640xbf16>, vector<640x128xbf16>, vector<128x128xf32> -> vector<128x128xf32>
    %c0_3 = arith.constant 0 : index
    %c0_4 = arith.constant 0 : index
    %20 = vector.load %arg3[%c0_3, %c0_4] : memref<1x128xf32, #tpu.memory_space<vmem>>, vector<1x128xf32>
    %21 = vector.broadcast %20 : vector<1x128xf32> to vector<128x128xf32>
    %22 = arith.addf %19, %21 : vector<128x128xf32>
    %cst_5 = arith.constant 0.000000e+00 : f32
    %23 = vector.broadcast %cst_5 : f32 to vector<128x128xf32>
    %24 = arith.maximumf %22, %23 : vector<128x128xf32>
    %25 = vector.shape_cast %24 : vector<128x128xf32> to vector<8x16x128xf32>
    %c0_6 = arith.constant 0 : index
    %c0_7 = arith.constant 0 : index
    %26 = vector.load %arg4[%c0_6, %c0_7] : memref<16x128xf32, #tpu.memory_space<vmem>>, vector<16x128xf32>
    %27 = vector.shape_cast %26 : vector<16x128xf32> to vector<1x16x128xf32>
    %28 = vector.broadcast %27 : vector<1x16x128xf32> to vector<8x16x128xf32>
    %29 = arith.addf %25, %28 : vector<8x16x128xf32>
    %cst_8 = arith.constant dense<0xFF800000> : vector<8x128xf32>
    %30 = vector.multi_reduction <maximumf>, %29, %cst_8 [1] : vector<8x16x128xf32> to vector<8x128xf32>
    %cst_9 = arith.constant 0.000000e+00 : f32
    %31 = vector.broadcast %cst_9 : f32 to vector<8x128xf32>
    %32 = arith.maximumf %30, %31 : vector<8x128xf32>
    %33 = arith.truncf %32 : vector<8x128xf32> to vector<8x128xbf16>
    %c0_10 = arith.constant 0 : index
    %c0_11 = arith.constant 0 : index
    %34 = vector.load %arg5[%c0_10, %c0_11] : memref<128x128xbf16, #tpu.memory_space<vmem>>, vector<128x128xbf16>
    %cst_12 = arith.constant dense<0.000000e+00> : vector<8x128xf32>
    %35 = tpu.matmul %33, %34, %cst_12 {dimension_numbers = #tpu.dot_dimension_numbers<[1], [0], [0], [1], [0, 0, 1, 1], [], []>} : vector<8x128xbf16>, vector<128x128xbf16>, vector<8x128xf32> -> vector<8x128xf32>
    %c0_13 = arith.constant 0 : index
    %c0_14 = arith.constant 0 : index
    %36 = vector.load %arg6[%c0_13, %c0_14] : memref<1x128xf32, #tpu.memory_space<vmem>>, vector<1x128xf32>
    %37 = vector.broadcast %36 : vector<1x128xf32> to vector<8x128xf32>
    %38 = arith.addf %35, %37 : vector<8x128xf32>
    %c0_15 = arith.constant 0 : index
    %c0_16 = arith.constant 0 : index
    %39 = vector.load %arg7[%c0_15, %c0_16] : memref<8x128xf32, #tpu.memory_space<vmem>>, vector<8x128xf32>
    tpu.vector_store %arg7[%c0_15, %c0_16], %38 {strides = array<i32>} : memref<8x128xf32, #tpu.memory_space<vmem>>, vector<8x128xf32>,
    return
  }
  func.func @transform_0(%arg0: i32) -> (i32, i32) {
    %c0_i32 = arith.constant 0 : i32
    %c0_i32_0 = arith.constant 0 : i32
    return %arg0, %c0_i32 : i32, i32
  }
  func.func @transform_1(%arg0: i32) -> (i32, i32) {
    %c0_i32 = arith.constant 0 : i32
    %c0_i32_0 = arith.constant 0 : i32
    %c0_i32_1 = arith.constant 0 : i32
    return %c0_i32, %c0_i32_0 : i32, i32
  }
  func.func @transform_2(%arg0: i32) -> (i32, i32) {
    %c0_i32 = arith.constant 0 : i32
    %c0_i32_0 = arith.constant 0 : i32
    %c0_i32_1 = arith.constant 0 : i32
    return %c0_i32, %c0_i32_0 : i32, i32
  }
  func.func @transform_3(%arg0: i32) -> (i32, i32) {
    %c0_i32 = arith.constant 0 : i32
    %c0_i32_0 = arith.constant 0 : i32
    %c0_i32_1 = arith.constant 0 : i32
    return %c0_i32, %c0_i32_0 : i32, i32
  }
  func.func @transform_4(%arg0: i32) -> (i32, i32) {
    %c0_i32 = arith.constant 0 : i32
    %c0_i32_0 = arith.constant 0 : i32
    %c0_i32_1 = arith.constant 0 : i32
    return %c0_i32, %c0_i32_0 : i32, i32
  }
  func.func @transform_5(%arg0: i32) -> (i32, i32) {
    %c0_i32 = arith.constant 0 : i32
    %c0_i32_0 = arith.constant 0 : i32
    %c0_i32_1 = arith.constant 0 : i32
    return %c0_i32, %c0_i32_0 : i32, i32
  }
  func.func @transform_6(%arg0: i32) -> (i32, i32) {
    %c0_i32 = arith.constant 0 : i32
    %c0_i32_0 = arith.constant 0 : i32
    return %arg0, %c0_i32 : i32, i32
  }
}

</mosaic_0001>

<llo_original>
// kernel: tpu_custom_call.1
$region0: #{tpu_custom_call.1}
  #allocation0 [shape = 'u32[]', space=smem, size = 0x4, offset = 0x4, fixed_abs, tag = 'smem constant byte address 0x4 - core index']
  #allocation1 [shape = 'u32[72,128]{1,0:T(1,128)}', space=vmem, size = 0x9000, scoped, tag = 'internal scratch']
  %s0 = inlined_call_operand.hbm [shape: s32[8,16], index: 0, kind: input, shape index: {}]
  %s1 = inlined_call_operand.hbm [shape: bf16[640,128], index: 1, kind: input, shape index: {}]
  %s2 = inlined_call_operand.vmem [shape: f32[1,128], index: 2, kind: input, shape index: {}]
  %s3 = inlined_call_operand.hbm [shape: f32[16,128], index: 3, kind: input, shape index: {}]
  %s4 = inlined_call_operand.hbm [shape: bf16[128,128], index: 4, kind: input, shape index: {}]
  %s5 = inlined_call_operand.vmem [shape: f32[1,128], index: 5, kind: input, shape index: {}]
  %s6 = inlined_call_operand.hbm [shape: f32[8,128], index: 6, kind: output, shape index: {}]
  %s7 = sld [smem:[#allocation0]]
  $region50: #{tpu_custom_call.1} parent=0
    _
  %s9 = ssub.s32 1, %s7
  %s10 = scalar_select 0, %s9, %s7
  $region1: #{tpu_custom_call.1} parent=0
    #allocation2 [shape = 'u8[4096]{0}', space=vmem, size = 0x1000, scoped, tag = 'input window, operand 0, single buffered']
    #allocation3 [shape = 's32[1]{0}', space=sflag, size = 0x4, scoped, tag = 'scoped memory for tpu_custom_call.1']
    #allocation4 [shape = 's32[1]{0}', space=sflag, size = 0x4, scoped, tag = 'scoped memory for tpu_custom_call.1']
    #allocation5 [shape = 'u8[163840]{0}', space=vmem, size = 0x28000, scoped, tag = 'input window, operand 1, single buffered']
    #allocation6 [shape = 's32[1]{0}', space=sflag, size = 0x4, scoped, tag = 'scoped memory for tpu_custom_call.1']
    #allocation7 [shape = 'u8[8192]{0}', space=vmem, size = 0x2000, scoped, tag = 'input window, operand 3, single buffered']
    #allocation8 [shape = 'u8[32768]{0}', space=vmem, size = 0x8000, scoped, tag = 'input window, operand 4, single buffered']
    #allocation9 [shape = 's32[1]{0}', space=sflag, size = 0x4, scoped, tag = 'scoped memory for tpu_custom_call.1']
    #allocation10 [shape = 'u8[4096]{0}', space=vmem, size = 0x1000, scoped, tag = 'output window, operand 0, single buffered']
    %11 = vsyncpa [#allocation3], 0
    %12 = vsyncpa [#allocation6], 0
    %13 = vsyncpa [#allocation9], 0
    %14 = vsyncpa [#allocation4], 0
    // Predicated region
    $region2: #{tpu_custom_call.1} parent=1 // pred_check
      _
    $region3: #{tpu_custom_call.1} parent=1 // pred_check_branch
      %16 = sbr.rel (0) target = $region5
    $region4: #{tpu_custom_call.1} parent=1 // pred_region
      %18 = vsyncadd [#allocation3], 0
      %s20 = sshll.u32 %s0, 4
      %s21 = int_to_ptr.hbm [resolvable:$true] %s20
      %s22 = sshll.u32 [#allocation2], 4
      %s23 = int_to_ptr.vmem [resolvable:$true] %s22
      %25 = dma.hbm_to_vmem [thread:$0]  %s21, 128, %s23, [#allocation3]
    $region5: #{tpu_custom_call.1} parent=1 // pred_fallthru
      _
    // Predicated region
    $region6: #{tpu_custom_call.1} parent=1 // pred_check
      _
    $region7: #{tpu_custom_call.1} parent=1 // pred_check_branch
      %27 = sbr.rel (0) target = $region9
    $region8: #{tpu_custom_call.1} parent=1 // pred_region
      %29 = vsyncadd [#allocation6], 0
      %s30 = sshll.u32 %s1, 4
      %s31 = int_to_ptr.hbm [resolvable:$true] %s30
      %s32 = sshll.u32 [#allocation5], 4
      %s33 = int_to_ptr.vmem [resolvable:$true] %s32
      %38 = dma.hbm_to_vmem [thread:$0]  %s31, 5120, %s33, [#allocation6], 64, 64, 4
    $region9: #{tpu_custom_call.1} parent=1 // pred_fallthru
      _
    // Predicated region
    $region10: #{tpu_custom_call.1} parent=1 // pred_check
      _
    $region11: #{tpu_custom_call.1} parent=1 // pred_check_branch
      %40 = sbr.rel (0) target = $region13
    $region12: #{tpu_custom_call.1} parent=1 // pred_region
      _
    $region13: #{tpu_custom_call.1} parent=1 // pred_fallthru
      _
    // Predicated region
    $region14: #{tpu_custom_call.1} parent=1 // pred_check
      _
    $region15: #{tpu_custom_call.1} parent=1 // pred_check_branch
      %42 = sbr.rel (0) target = $region17
    $region16: #{tpu_custom_call.1} parent=1 // pred_region
      %44 = vsyncadd [#allocation6], 0
      %s45 = sshll.u32 %s3, 4
      %s46 = int_to_ptr.hbm [resolvable:$true] %s45
      %s47 = sshll.u32 [#allocation7], 4
      %s48 = int_to_ptr.vmem [resolvable:$true] %s47
      %53 = dma.hbm_to_vmem [thread:$0]  %s46, 256, %s48, [#allocation6], 128, 128, 8
    $region17: #{tpu_custom_call.1} parent=1 // pred_fallthru
      _
    // Predicated region
    $region18: #{tpu_custom_call.1} parent=1 // pred_check
      _
    $region19: #{tpu_custom_call.1} parent=1 // pred_check_branch
      %55 = sbr.rel (0) target = $region21
    $region20: #{tpu_custom_call.1} parent=1 // pred_region
      %57 = vsyncadd [#allocation9], 0
      %s58 = sshll.u32 %s4, 4
      %s59 = int_to_ptr.hbm [resolvable:$true] %s58
      %s60 = sshll.u32 [#allocation8], 4
      %s61 = int_to_ptr.vmem [resolvable:$true] %s60
      %66 = dma.hbm_to_vmem [thread:$0]  %s59, 1024, %s61, [#allocation9], 64, 64, 4
    $region21: #{tpu_custom_call.1} parent=1 // pred_fallthru
      _
    // Predicated region
    $region22: #{tpu_custom_call.1} parent=1 // pred_check
      _
    $region23: #{tpu_custom_call.1} parent=1 // pred_check_branch
      %68 = sbr.rel (0) target = $region25
    $region24: #{tpu_custom_call.1} parent=1 // pred_region
      _
    $region25: #{tpu_custom_call.1} parent=1 // pred_fallthru
      _
    // Predicated region
    $region26: #{tpu_custom_call.1} parent=1 // pred_check
      _
    $region27: #{tpu_custom_call.1} parent=1 // pred_check_branch
      %70 = sbr.rel (0) target = $region29
    $region28: #{tpu_custom_call.1} parent=1 // pred_region
      %72 = dma.done [#allocation3], 128
    $region29: #{tpu_custom_call.1} parent=1 // pred_fallthru
      _
    // Predicated region
    $region30: #{tpu_custom_call.1} parent=1 // pred_check
      _
    $region31: #{tpu_custom_call.1} parent=1 // pred_check_branch
      %74 = sbr.rel (0) target = $region33
    $region32: #{tpu_custom_call.1} parent=1 // pred_region
      %76 = dma.done [#allocation6], 5120
    $region33: #{tpu_custom_call.1} parent=1 // pred_fallthru
      _
    // Predicated region
    $region34: #{tpu_custom_call.1} parent=1 // pred_check
      _
    $region35: #{tpu_custom_call.1} parent=1 // pred_check_branch
      %78 = sbr.rel (0) target = $region37
    $region36: #{tpu_custom_call.1} parent=1 // pred_region
      %80 = dma.done [#allocation6], 256
    $region37: #{tpu_custom_call.1} parent=1 // pred_fallthru
      _
    // Predicated region
    $region38: #{tpu_custom_call.1} parent=1 // pred_check
      _
    $region39: #{tpu_custom_call.1} parent=1 // pred_check_branch
      %82 = sbr.rel (0) target = $region41
    $region40: #{tpu_custom_call.1} parent=1 // pred_region
      %84 = dma.done [#allocation9], 1024
    $region41: #{tpu_custom_call.1} parent=1 // pred_fallthru
      _
    %v85 = vld [vmem:[#allocation2] sm:$0xff]
    %v86 = vlaneseq
    %v87 = vand.u32 %v86, 127
    %v88 = vperm.slane %v85, 0
    %v89 = vlaneseq
    %v90 = vshrl.u32 %v89, 7
    %92 = vset.pattern.permute.xlu0 %v90
    %93 = vperm.xlu0 %92, %v88
    %v94 = vpop.permute.xlu0 %93
    %v95 = vlaneseq
    %v96 = vshrl.u32 %v95, 7
    %v97 = vadd.s32 %v96, 8
    %98 = vset.pattern.permute.xlu0 %v97
    %99 = vperm.xlu0 %98, %v88
    %v100 = vpop.permute.xlu0 %99
    %v101 = vperm.slane %v85, 1
    %v102 = vlaneseq
    %v103 = vshrl.u32 %v102, 7
    %105 = vset.pattern.permute.xlu0 %v103
    %106 = vperm.xlu0 %105, %v101
    %v107 = vpop.permute.xlu0 %106
    %v108 = vlaneseq
    %v109 = vshrl.u32 %v108, 7
    %v110 = vadd.s32 %v109, 8
    %111 = vset.pattern.permute.xlu0 %v110
    %112 = vperm.xlu0 %111, %v101
    %v113 = vpop.permute.xlu0 %112
    %v114 = vperm.slane %v85, 2
    %v115 = vlaneseq
    %v116 = vshrl.u32 %v115, 7
    %118 = vset.pattern.permute.xlu0 %v116
    %119 = vperm.xlu0 %118, %v114
    %v120 = vpop.permute.xlu0 %119
    %v121 = vlaneseq
    %v122 = vshrl.u32 %v121, 7
    %v123 = vadd.s32 %v122, 8
    %124 = vset.pattern.permute.xlu0 %v123
    %125 = vperm.xlu0 %124, %v114
    %v126 = vpop.permute.xlu0 %125
    %v127 = vperm.slane %v85, 3
    %v128 = vlaneseq
    %v129 = vshrl.u32 %v128, 7
    %131 = vset.pattern.permute.xlu0 %v129
    %132 = vperm.xlu0 %131, %v127
    %v133 = vpop.permute.xlu0 %132
    %v134 = vlaneseq
    %v135 = vshrl.u32 %v134, 7
    %v136 = vadd.s32 %v135, 8
    %137 = vset.pattern.permute.xlu0 %v136
    %138 = vperm.xlu0 %137, %v127
    %v139 = vpop.permute.xlu0 %138
    %v140 = vperm.slane %v85, 4
    %v141 = vlaneseq
    %v142 = vshrl.u32 %v141, 7
    %144 = vset.pattern.permute.xlu0 %v142
    %145 = vperm.xlu0 %144, %v140
    %v146 = vpop.permute.xlu0 %145
    %v147 = vlaneseq
    %v148 = vshrl.u32 %v147, 7
    %v149 = vadd.s32 %v148, 8
    %150 = vset.pattern.permute.xlu0 %v149
    %151 = vperm.xlu0 %150, %v140
    %v152 = vpop.permute.xlu0 %151
    %v153 = vperm.slane %v85, 5
    %v154 = vlaneseq
    %v155 = vshrl.u32 %v154, 7
    %157 = vset.pattern.permute.xlu0 %v155
    %158 = vperm.xlu0 %157, %v153
    %v159 = vpop.permute.xlu0 %158
    %v160 = vlaneseq
    %v161 = vshrl.u32 %v160, 7
    %v162 = vadd.s32 %v161, 8
    %163 = vset.pattern.permute.xlu0 %v162
    %164 = vperm.xlu0 %163, %v153
    %v165 = vpop.permute.xlu0 %164
    %v166 = vperm.slane %v85, 6
    %v167 = vlaneseq
    %v168 = vshrl.u32 %v167, 7
    %170 = vset.pattern.permute.xlu0 %v168
    %171 = vperm.xlu0 %170, %v166
    %v172 = vpop.permute.xlu0 %171
    %v173 = vlaneseq
    %v174 = vshrl.u32 %v173, 7
    %v175 = vadd.s32 %v174, 8
    %176 = vset.pattern.permute.xlu0 %v175
    %177 = vperm.xlu0 %176, %v166
    %v178 = vpop.permute.xlu0 %177
    %v179 = vperm.slane %v85, 7
    %v180 = vlaneseq
    %v181 = vshrl.u32 %v180, 7
    %183 = vset.pattern.permute.xlu0 %v181
    %184 = vperm.xlu0 %183, %v179
    %v185 = vpop.permute.xlu0 %184
    %v186 = vlaneseq
    %v187 = vshrl.u32 %v186, 7
    %v188 = vadd.s32 %v187, 8
    %189 = vset.pattern.permute.xlu0 %v188
    %190 = vperm.xlu0 %189, %v179
    %v191 = vpop.permute.xlu0 %190
    %vm192 = vcmp.eq.s32.totalorder %v87, %v94
    %vm193 = vcmp.eq.s32.totalorder %v87, %v100
    %vm194 = vcmp.eq.s32.totalorder %v87, %v107
    %vm195 = vcmp.eq.s32.totalorder %v87, %v113
    %vm196 = vcmp.eq.s32.totalorder %v87, %v120
    %vm197 = vcmp.eq.s32.totalorder %v87, %v126
    %vm198 = vcmp.eq.s32.totalorder %v87, %v133
    %vm199 = vcmp.eq.s32.totalorder %v87, %v139
    %vm200 = vcmp.eq.s32.totalorder %v87, %v146
    %vm201 = vcmp.eq.s32.totalorder %v87, %v152
    %vm202 = vcmp.eq.s32.totalorder %v87, %v159
    %vm203 = vcmp.eq.s32.totalorder %v87, %v165
    %vm204 = vcmp.eq.s32.totalorder %v87, %v172
    %vm205 = vcmp.eq.s32.totalorder %v87, %v178
    %vm206 = vcmp.eq.s32.totalorder %v87, %v185
    %vm207 = vcmp.eq.s32.totalorder %v87, %v191
    %v208 = vsel %vm192, 1, 0
    %v209 = vsel %vm193, 1, 0
    %v210 = vsel %vm194, 1, 0
    %v211 = vsel %vm195, 1, 0
    %v212 = vsel %vm196, 1, 0
    %v213 = vsel %vm197, 1, 0
    %v214 = vsel %vm198, 1, 0
    %v215 = vsel %vm199, 1, 0
    %v216 = vsel %vm200, 1, 0
    %v217 = vsel %vm201, 1, 0
    %v218 = vsel %vm202, 1, 0
    %v219 = vsel %vm203, 1, 0
    %v220 = vsel %vm204, 1, 0
    %v221 = vsel %vm205, 1, 0
    %v222 = vsel %vm206, 1, 0
    %v223 = vsel %vm207, 1, 0
    %v224 = vcvt.s32.f32 %v208
    %v225 = vcvt.s32.f32 %v209
    %v226 = vcvt.s32.f32 %v210
    %v227 = vcvt.s32.f32 %v211
    %v228 = vcvt.s32.f32 %v212
    %v229 = vcvt.s32.f32 %v213
    %v230 = vcvt.s32.f32 %v214
    %v231 = vcvt.s32.f32 %v215
    %v232 = vcvt.s32.f32 %v216
    %v233 = vcvt.s32.f32 %v217
    %v234 = vcvt.s32.f32 %v218
    %v235 = vcvt.s32.f32 %v219
    %v236 = vcvt.s32.f32 %v220
    %v237 = vcvt.s32.f32 %v221
    %v238 = vcvt.s32.f32 %v222
    %v239 = vcvt.s32.f32 %v223
    %v240 = vpack.c.bf16 %v224, %v224
    %v241 = vpack.c.bf16 %v225, %v225
    %v242 = vpack.c.bf16 %v226, %v226
    %v243 = vpack.c.bf16 %v227, %v227
    %v244 = vpack.c.bf16 %v228, %v228
    %v245 = vpack.c.bf16 %v229, %v229
    %v246 = vpack.c.bf16 %v230, %v230
    %v247 = vpack.c.bf16 %v231, %v231
    %v248 = vpack.c.bf16 %v232, %v232
    %v249 = vpack.c.bf16 %v233, %v233
    %v250 = vpack.c.bf16 %v234, %v234
    %v251 = vpack.c.bf16 %v235, %v235
    %v252 = vpack.c.bf16 %v236, %v236
    %v253 = vpack.c.bf16 %v237, %v237
    %v254 = vpack.c.bf16 %v238, %v238
    %v255 = vpack.c.bf16 %v239, %v239
    %v256 = vrot.slane %v224, 1
    %v257 = vrot.slane %v225, 1
    %v258 = vrot.slane %v226, 1
    %v259 = vrot.slane %v227, 1
    %v260 = vrot.slane %v228, 1
    %v261 = vrot.slane %v229, 1
    %v262 = vrot.slane %v230, 1
    %v263 = vrot.slane %v231, 1
    %v264 = vrot.slane %v232, 1
    %v265 = vrot.slane %v233, 1
    %v266 = vrot.slane %v234, 1
    %v267 = vrot.slane %v235, 1
    %v268 = vrot.slane %v236, 1
    %v269 = vrot.slane %v237, 1
    %v270 = vrot.slane %v238, 1
    %v271 = vrot.slane %v239, 1
    %v272 = vlaneseq
    %v273 = vshrl.u32 %v272, 7
    %vm274 = vcmp.lt.s32.totalorder %v273, 7
    %v275 = vsel %vm274, %v270, %v271
    %v276 = vsel %vm274, %v269, %v270
    %v277 = vsel %vm274, %v268, %v269
    %v278 = vsel %vm274, %v267, %v268
    %v279 = vsel %vm274, %v266, %v267
    %v280 = vsel %vm274, %v265, %v266
    %v281 = vsel %vm274, %v264, %v265
    %v282 = vsel %vm274, %v263, %v264
    %v283 = vsel %vm274, %v262, %v263
    %v284 = vsel %vm274, %v261, %v262
    %v285 = vsel %vm274, %v260, %v261
    %v286 = vsel %vm274, %v259, %v260
    %v287 = vsel %vm274, %v258, %v259
    %v288 = vsel %vm274, %v257, %v258
    %v289 = vsel %vm274, %v256, %v257
    %v290 = vsel %vm274, %v271, %v256
    %v291 = vpack.c.bf16 %v289, %v289
    %v292 = vpack.c.bf16 %v288, %v288
    %v293 = vpack.c.bf16 %v287, %v287
    %v294 = vpack.c.bf16 %v286, %v286
    %v295 = vpack.c.bf16 %v285, %v285
    %v296 = vpack.c.bf16 %v284, %v284
    %v297 = vpack.c.bf16 %v283, %v283
    %v298 = vpack.c.bf16 %v282, %v282
    %v299 = vpack.c.bf16 %v281, %v281
    %v300 = vpack.c.bf16 %v280, %v280
    %v301 = vpack.c.bf16 %v279, %v279
    %v302 = vpack.c.bf16 %v278, %v278
    %v303 = vpack.c.bf16 %v277, %v277
    %v304 = vpack.c.bf16 %v276, %v276
    %v305 = vpack.c.bf16 %v275, %v275
    %v306 = vpack.c.bf16 %v290, %v290
    %v307 = vrot.slane %v224, 2
    %v308 = vrot.slane %v225, 2
    %v309 = vrot.slane %v226, 2
    %v310 = vrot.slane %v227, 2
    %v311 = vrot.slane %v228, 2
    %v312 = vrot.slane %v229, 2
    %v313 = vrot.slane %v230, 2
    %v314 = vrot.slane %v231, 2
    %v315 = vrot.slane %v232, 2
    %v316 = vrot.slane %v233, 2
    %v317 = vrot.slane %v234, 2
    %v318 = vrot.slane %v235, 2
    %v319 = vrot.slane %v236, 2
    %v320 = vrot.slane %v237, 2
    %v321 = vrot.slane %v238, 2
    %v322 = vrot.slane %v239, 2
    %vm323 = vcmp.lt.s32.totalorder %v273, 6
    %v324 = vsel %vm323, %v321, %v322
    %v325 = vsel %vm323, %v320, %v321
    %v326 = vsel %vm323, %v319, %v320
    %v327 = vsel %vm323, %v318, %v319
    %v328 = vsel %vm323, %v317, %v318
    %v329 = vsel %vm323, %v316, %v317
    %v330 = vsel %vm323, %v315, %v316
    %v331 = vsel %vm323, %v314, %v315
    %v332 = vsel %vm323, %v313, %v314
    %v333 = vsel %vm323, %v312, %v313
    %v334 = vsel %vm323, %v311, %v312
    %v335 = vsel %vm323, %v310, %v311
    %v336 = vsel %vm323, %v309, %v310
    %v337 = vsel %vm323, %v308, %v309
    %v338 = vsel %vm323, %v307, %v308
    %v339 = vsel %vm323, %v322, %v307
    %v340 = vpack.c.bf16 %v338, %v338
    %v341 = vpack.c.bf16 %v337, %v337
    %v342 = vpack.c.bf16 %v336, %v336
    %v343 = vpack.c.bf16 %v335, %v335
    %v344 = vpack.c.bf16 %v334, %v334
    %v345 = vpack.c.bf16 %v333, %v333
    %v346 = vpack.c.bf16 %v332, %v332
    %v347 = vpack.c.bf16 %v331, %v331
    %v348 = vpack.c.bf16 %v330, %v330
    %v349 = vpack.c.bf16 %v329, %v329
    %v350 = vpack.c.bf16 %v328, %v328
    %v351 = vpack.c.bf16 %v327, %v327
    %v352 = vpack.c.bf16 %v326, %v326
    %v353 = vpack.c.bf16 %v325, %v325
    %v354 = vpack.c.bf16 %v324, %v324
    %v355 = vpack.c.bf16 %v339, %v339
    %v356 = vrot.slane %v224, 3
    %v357 = vrot.slane %v225, 3
    %v358 = vrot.slane %v226, 3
    %v359 = vrot.slane %v227, 3
    %v360 = vrot.slane %v228, 3
    %v361 = vrot.slane %v229, 3
    %v362 = vrot.slane %v230, 3
    %v363 = vrot.slane %v231, 3
    %v364 = vrot.slane %v232, 3
    %v365 = vrot.slane %v233, 3
    %v366 = vrot.slane %v234, 3
    %v367 = vrot.slane %v235, 3
    %v368 = vrot.slane %v236, 3
    %v369 = vrot.slane %v237, 3
    %v370 = vrot.slane %v238, 3
    %v371 = vrot.slane %v239, 3
    %vm372 = vcmp.lt.s32.totalorder %v273, 5
    %v373 = vsel %vm372, %v370, %v371
    %v374 = vsel %vm372, %v369, %v370
    %v375 = vsel %vm372, %v368, %v369
    %v376 = vsel %vm372, %v367, %v368
    %v377 = vsel %vm372, %v366, %v367
    %v378 = vsel %vm372, %v365, %v366
    %v379 = vsel %vm372, %v364, %v365
    %v380 = vsel %vm372, %v363, %v364
    %v381 = vsel %vm372, %v362, %v363
    %v382 = vsel %vm372, %v361, %v362
    %v383 = vsel %vm372, %v360, %v361
    %v384 = vsel %vm372, %v359, %v360
    %v385 = vsel %vm372, %v358, %v359
    %v386 = vsel %vm372, %v357, %v358
    %v387 = vsel %vm372, %v356, %v357
    %v388 = vsel %vm372, %v371, %v356
    %v389 = vpack.c.bf16 %v387, %v387
    %v390 = vpack.c.bf16 %v386, %v386
    %v391 = vpack.c.bf16 %v385, %v385
    %v392 = vpack.c.bf16 %v384, %v384
    %v393 = vpack.c.bf16 %v383, %v383
    %v394 = vpack.c.bf16 %v382, %v382
    %v395 = vpack.c.bf16 %v381, %v381
    %v396 = vpack.c.bf16 %v380, %v380
    %v397 = vpack.c.bf16 %v379, %v379
    %v398 = vpack.c.bf16 %v378, %v378
    %v399 = vpack.c.bf16 %v377, %v377
    %v400 = vpack.c.bf16 %v376, %v376
    %v401 = vpack.c.bf16 %v375, %v375
    %v402 = vpack.c.bf16 %v374, %v374
    %v403 = vpack.c.bf16 %v373, %v373
    %v404 = vpack.c.bf16 %v388, %v388
    %v405 = vrot.slane %v224, 4
    %v406 = vrot.slane %v225, 4
    %v407 = vrot.slane %v226, 4
    %v408 = vrot.slane %v227, 4
    %v409 = vrot.slane %v228, 4
    %v410 = vrot.slane %v229, 4
    %v411 = vrot.slane %v230, 4
    %v412 = vrot.slane %v231, 4
    %v413 = vrot.slane %v232, 4
    %v414 = vrot.slane %v233, 4
    %v415 = vrot.slane %v234, 4
    %v416 = vrot.slane %v235, 4
    %v417 = vrot.slane %v236, 4
    %v418 = vrot.slane %v237, 4
    %v419 = vrot.slane %v238, 4
    %v420 = vrot.slane %v239, 4
    %vm421 = vcmp.lt.s32.totalorder %v273, 4
    %v422 = vsel %vm421, %v419, %v420
    %v423 = vsel %vm421, %v418, %v419
    %v424 = vsel %vm421, %v417, %v418
    %v425 = vsel %vm421, %v416, %v417
    %v426 = vsel %vm421, %v415, %v416
    %v427 = vsel %vm421, %v414, %v415
    %v428 = vsel %vm421, %v413, %v414
    %v429 = vsel %vm421, %v412, %v413
    %v430 = vsel %vm421, %v411, %v412
    %v431 = vsel %vm421, %v410, %v411
    %v432 = vsel %vm421, %v409, %v410
    %v433 = vsel %vm421, %v408, %v409
    %v434 = vsel %vm421, %v407, %v408
    %v435 = vsel %vm421, %v406, %v407
    %v436 = vsel %vm421, %v405, %v406
    %v437 = vsel %vm421, %v420, %v405
    %v438 = vpack.c.bf16 %v436, %v436
    %v439 = vpack.c.bf16 %v435, %v435
    %v440 = vpack.c.bf16 %v434, %v434
    %v441 = vpack.c.bf16 %v433, %v433
    %v442 = vpack.c.bf16 %v432, %v432
    %v443 = vpack.c.bf16 %v431, %v431
    %v444 = vpack.c.bf16 %v430, %v430
    %v445 = vpack.c.bf16 %v429, %v429
    %v446 = vpack.c.bf16 %v428, %v428
    %v447 = vpack.c.bf16 %v427, %v427
    %v448 = vpack.c.bf16 %v426, %v426
    %v449 = vpack.c.bf16 %v425, %v425
    %v450 = vpack.c.bf16 %v424, %v424
    %v451 = vpack.c.bf16 %v423, %v423
    %v452 = vpack.c.bf16 %v422, %v422
    %v453 = vpack.c.bf16 %v437, %v437
    %v470 = vunpack.c.l.b16 %v240
    %v471 = vunpack.c.l.b16 %v241
    %v472 = vunpack.c.l.b16 %v242
    %v473 = vunpack.c.l.b16 %v243
    %v474 = vunpack.c.l.b16 %v244
    %v475 = vunpack.c.l.b16 %v245
    %v476 = vunpack.c.l.b16 %v246
    %v477 = vunpack.c.l.b16 %v247
    %v478 = vunpack.c.l.b16 %v248
    %v479 = vunpack.c.l.b16 %v249
    %v480 = vunpack.c.l.b16 %v250
    %v481 = vunpack.c.l.b16 %v251
    %v482 = vunpack.c.l.b16 %v252
    %v483 = vunpack.c.l.b16 %v253
    %v484 = vunpack.c.l.b16 %v254
    %v485 = vunpack.c.l.b16 %v255
    %v486 = vpack.c.b16 %v471, %v470
    %v487 = vpack.c.b16 %v473, %v472
    %v488 = vpack.c.b16 %v475, %v474
    %v489 = vpack.c.b16 %v477, %v476
    %v490 = vpack.c.b16 %v479, %v478
    %v491 = vpack.c.b16 %v481, %v480
    %v492 = vpack.c.b16 %v483, %v482
    %v493 = vpack.c.b16 %v485, %v484
    %v518 = vunpack.c.l.b16 %v291
    %v519 = vunpack.c.l.b16 %v292
    %v520 = vunpack.c.l.b16 %v293
    %v521 = vunpack.c.l.b16 %v294
    %v522 = vunpack.c.l.b16 %v295
    %v523 = vunpack.c.l.b16 %v296
    %v524 = vunpack.c.l.b16 %v297
    %v525 = vunpack.c.l.b16 %v298
    %v526 = vunpack.c.l.b16 %v299
    %v527 = vunpack.c.l.b16 %v300
    %v528 = vunpack.c.l.b16 %v301
    %v529 = vunpack.c.l.b16 %v302
    %v530 = vunpack.c.l.b16 %v303
    %v531 = vunpack.c.l.b16 %v304
    %v532 = vunpack.c.l.b16 %v305
    %v533 = vunpack.c.l.b16 %v306
    %v534 = vpack.c.b16 %v519, %v518
    %v535 = vpack.c.b16 %v521, %v520
    %v536 = vpack.c.b16 %v523, %v522
    %v537 = vpack.c.b16 %v525, %v524
    %v538 = vpack.c.b16 %v527, %v526
    %v539 = vpack.c.b16 %v529, %v528
    %v540 = vpack.c.b16 %v531, %v530
    %v541 = vpack.c.b16 %v533, %v532
    %v566 = vunpack.c.l.b16 %v340
    %v567 = vunpack.c.l.b16 %v341
    %v568 = vunpack.c.l.b16 %v342
    %v569 = vunpack.c.l.b16 %v343
    %v570 = vunpack.c.l.b16 %v344
    %v571 = vunpack.c.l.b16 %v345
    %v572 = vunpack.c.l.b16 %v346
    %v573 = vunpack.c.l.b16 %v347
    %v574 = vunpack.c.l.b16 %v348
    %v575 = vunpack.c.l.b16 %v349
    %v576 = vunpack.c.l.b16 %v350
    %v577 = vunpack.c.l.b16 %v351
    %v578 = vunpack.c.l.b16 %v352
    %v579 = vunpack.c.l.b16 %v353
    %v580 = vunpack.c.l.b16 %v354
    %v581 = vunpack.c.l.b16 %v355
    %v582 = vpack.c.b16 %v567, %v566
    %v583 = vpack.c.b16 %v569, %v568
    %v584 = vpack.c.b16 %v571, %v570
    %v585 = vpack.c.b16 %v573, %v572
    %v586 = vpack.c.b16 %v575, %v574
    %v587 = vpack.c.b16 %v577, %v576
    %v588 = vpack.c.b16 %v579, %v578
    %v589 = vpack.c.b16 %v581, %v580
    %v614 = vunpack.c.l.b16 %v389
    %v615 = vunpack.c.l.b16 %v390
    %v616 = vunpack.c.l.b16 %v391
    %v617 = vunpack.c.l.b16 %v392
    %v618 = vunpack.c.l.b16 %v393
    %v619 = vunpack.c.l.b16 %v394
    %v620 = vunpack.c.l.b16 %v395
    %v621 = vunpack.c.l.b16 %v396
    %v622 = vunpack.c.l.b16 %v397
    %v623 = vunpack.c.l.b16 %v398
    %v624 = vunpack.c.l.b16 %v399
    %v625 = vunpack.c.l.b16 %v400
    %v626 = vunpack.c.l.b16 %v401
    %v627 = vunpack.c.l.b16 %v402
    %v628 = vunpack.c.l.b16 %v403
    %v629 = vunpack.c.l.b16 %v404
    %v630 = vpack.c.b16 %v615, %v614
    %v631 = vpack.c.b16 %v617, %v616
    %v632 = vpack.c.b16 %v619, %v618
    %v633 = vpack.c.b16 %v621, %v620
    %v634 = vpack.c.b16 %v623, %v622
    %v635 = vpack.c.b16 %v625, %v624
    %v636 = vpack.c.b16 %v627, %v626
    %v637 = vpack.c.b16 %v629, %v628
    %v662 = vunpack.c.l.b16 %v438
    %v663 = vunpack.c.l.b16 %v439
    %v664 = vunpack.c.l.b16 %v440
    %v665 = vunpack.c.l.b16 %v441
    %v666 = vunpack.c.l.b16 %v442
    %v667 = vunpack.c.l.b16 %v443
    %v668 = vunpack.c.l.b16 %v444
    %v669 = vunpack.c.l.b16 %v445
    %v670 = vunpack.c.l.b16 %v446
    %v671 = vunpack.c.l.b16 %v447
    %v672 = vunpack.c.l.b16 %v448
    %v673 = vunpack.c.l.b16 %v449
    %v674 = vunpack.c.l.b16 %v450
    %v675 = vunpack.c.l.b16 %v451
    %v676 = vunpack.c.l.b16 %v452
    %v677 = vunpack.c.l.b16 %v453
    %v678 = vpack.c.b16 %v663, %v662
    %v679 = vpack.c.b16 %v665, %v664
    %v680 = vpack.c.b16 %v667, %v666
    %v681 = vpack.c.b16 %v669, %v668
    %v682 = vpack.c.b16 %v671, %v670
    %v683 = vpack.c.b16 %v673, %v672
    %v684 = vpack.c.b16 %v675, %v674
    %v685 = vpack.c.b16 %v677, %v676
    %v694 = vld [vmem:[#allocation5] sm:$0xf]
    %v695 = vld [vmem:[#allocation5 + $0x4] sm:$0xf]
    %v696 = vld [vmem:[#allocation5 + $0x8] sm:$0xf]
    %v697 = vld [vmem:[#allocation5 + $0xc] sm:$0xf]
    %v698 = vld [vmem:[#allocation5 + $0x10] sm:$0xf]
    %v699 = vld [vmem:[#allocation5 + $0x14] sm:$0xf]
    %v700 = vld [vmem:[#allocation5 + $0x18] sm:$0xf]
    %v701 = vld [vmem:[#allocation5 + $0x1c] sm:$0xf]
    %v702 = vld [vmem:[#allocation5 + $0x20] sm:$0xf]
    %v703 = vld [vmem:[#allocation5 + $0x24] sm:$0xf]
    %v704 = vld [vmem:[#allocation5 + $0x28] sm:$0xf]
    %v705 = vld [vmem:[#allocation5 + $0x2c] sm:$0xf]
    %v706 = vld [vmem:[#allocation5 + $0x30] sm:$0xf]
    %v707 = vld [vmem:[#allocation5 + $0x34] sm:$0xf]
    %v708 = vld [vmem:[#allocation5 + $0x38] sm:$0xf]
    %v709 = vld [vmem:[#allocation5 + $0x3c] sm:$0xf]
    %v710 = vld [vmem:[#allocation5 + $0x40] sm:$0xf]
    %v711 = vld [vmem:[#allocation5 + $0x44] sm:$0xf]
    %v712 = vld [vmem:[#allocation5 + $0x48] sm:$0xf]
    %v713 = vld [vmem:[#allocation5 + $0x4c] sm:$0xf]
    %v714 = vld [vmem:[#allocation5 + $0x50] sm:$0xf]
    %v715 = vld [vmem:[#allocation5 + $0x54] sm:$0xf]
    %v716 = vld [vmem:[#allocation5 + $0x58] sm:$0xf]
    %v717 = vld [vmem:[#allocation5 + $0x5c] sm:$0xf]
    %v718 = vld [vmem:[#allocation5 + $0x60] sm:$0xf]
    %v719 = vld [vmem:[#allocation5 + $0x64] sm:$0xf]
    %v720 = vld [vmem:[#allocation5 + $0x68] sm:$0xf]
    %v721 = vld [vmem:[#allocation5 + $0x6c] sm:$0xf]
    %v722 = vld [vmem:[#allocation5 + $0x70] sm:$0xf]
    %v723 = vld [vmem:[#allocation5 + $0x74] sm:$0xf]
    %v724 = vld [vmem:[#allocation5 + $0x78] sm:$0xf]
    %v725 = vld [vmem:[#allocation5 + $0x7c] sm:$0xf]
    %v726 = vld [vmem:[#allocation5 + $0x80] sm:$0xf]
    %v727 = vld [vmem:[#allocation5 + $0x84] sm:$0xf]
    %v728 = vld [vmem:[#allocation5 + $0x88] sm:$0xf]
    %v729 = vld [vmem:[#allocation5 + $0x8c] sm:$0xf]
    %v730 = vld [vmem:[#allocation5 + $0x90] sm:$0xf]
    %v731 = vld [vmem:[#allocation5 + $0x94] sm:$0xf]
    %v732 = vld [vmem:[#allocation5 + $0x98] sm:$0xf]
    %v733 = vld [vmem:[#allocation5 + $0x9c] sm:$0xf]
    %v734 = vld [vmem:[#allocation5 + $0xa0] sm:$0xf]
    %v735 = vld [vmem:[#allocation5 + $0xa4] sm:$0xf]
    %v736 = vld [vmem:[#allocation5 + $0xa8] sm:$0xf]
    %v737 = vld [vmem:[#allocation5 + $0xac] sm:$0xf]
    %v738 = vld [vmem:[#allocation5 + $0xb0] sm:$0xf]
    %v739 = vld [vmem:[#allocation5 + $0xb4] sm:$0xf]
    %v740 = vld [vmem:[#allocation5 + $0xb8] sm:$0xf]
    %v741 = vld [vmem:[#allocation5 + $0xbc] sm:$0xf]
    %v742 = vld [vmem:[#allocation5 + $0xc0] sm:$0xf]
    %v743 = vld [vmem:[#allocation5 + $0xc4] sm:$0xf]
    %v744 = vld [vmem:[#allocation5 + $0xc8] sm:$0xf]
    %v745 = vld [vmem:[#allocation5 + $0xcc] sm:$0xf]
    %v746 = vld [vmem:[#allocation5 + $0xd0] sm:$0xf]
    %v747 = vld [vmem:[#allocation5 + $0xd4] sm:$0xf]
    %v748 = vld [vmem:[#allocation5 + $0xd8] sm:$0xf]
    %v749 = vld [vmem:[#allocation5 + $0xdc] sm:$0xf]
    %v750 = vld [vmem:[#allocation5 + $0xe0] sm:$0xf]
    %v751 = vld [vmem:[#allocation5 + $0xe4] sm:$0xf]
    %v752 = vld [vmem:[#allocation5 + $0xe8] sm:$0xf]
    %v753 = vld [vmem:[#allocation5 + $0xec] sm:$0xf]
    %v754 = vld [vmem:[#allocation5 + $0xf0] sm:$0xf]
    %v755 = vld [vmem:[#allocation5 + $0xf4] sm:$0xf]
    %v756 = vld [vmem:[#allocation5 + $0xf8] sm:$0xf]
    %v757 = vld [vmem:[#allocation5 + $0xfc] sm:$0xf]
    %v758 = vld [vmem:[#allocation5 + $0x100] sm:$0xf]
    %v759 = vld [vmem:[#allocation5 + $0x104] sm:$0xf]
    %v760 = vld [vmem:[#allocation5 + $0x108] sm:$0xf]
    %v761 = vld [vmem:[#allocation5 + $0x10c] sm:$0xf]
    %v762 = vld [vmem:[#allocation5 + $0x110] sm:$0xf]
    %v763 = vld [vmem:[#allocation5 + $0x114] sm:$0xf]
    %v764 = vld [vmem:[#allocation5 + $0x118] sm:$0xf]
    %v765 = vld [vmem:[#allocation5 + $0x11c] sm:$0xf]
    %v766 = vld [vmem:[#allocation5 + $0x120] sm:$0xf]
    %v767 = vld [vmem:[#allocation5 + $0x124] sm:$0xf]
    %v768 = vld [vmem:[#allocation5 + $0x128] sm:$0xf]
    %v769 = vld [vmem:[#allocation5 + $0x12c] sm:$0xf]
    %v770 = vld [vmem:[#allocation5 + $0x130] sm:$0xf]
    %v771 = vld [vmem:[#allocation5 + $0x134] sm:$0xf]
    %v772 = vld [vmem:[#allocation5 + $0x138] sm:$0xf]
    %v773 = vld [vmem:[#allocation5 + $0x13c] sm:$0xf]
    %v774 = vld [vmem:[%s2] sm:$0x1]
    %v776 = vperm.slane %v774, 0
    %v858 = vunpack.c.l.b16 %v694
    %v859 = vunpack.c.l.b16 %v695
    %v860 = vunpack.c.l.b16 %v696
    %v861 = vunpack.c.l.b16 %v697
    %v862 = vunpack.c.l.b16 %v698
    %v863 = vunpack.c.l.b16 %v699
    %v864 = vunpack.c.l.b16 %v700
    %v865 = vunpack.c.l.b16 %v701
    %v866 = vunpack.c.l.b16 %v702
    %v867 = vunpack.c.l.b16 %v703
    %v868 = vunpack.c.l.b16 %v704
    %v869 = vunpack.c.l.b16 %v705
    %v870 = vunpack.c.l.b16 %v706
    %v871 = vunpack.c.l.b16 %v707
    %v872 = vunpack.c.l.b16 %v708
    %v873 = vunpack.c.l.b16 %v709
    %v874 = vunpack.c.l.b16 %v710
    %v875 = vunpack.c.l.b16 %v711
    %v876 = vunpack.c.l.b16 %v712
    %v877 = vunpack.c.l.b16 %v713
    %v878 = vunpack.c.l.b16 %v714
    %v879 = vunpack.c.l.b16 %v715
    %v880 = vunpack.c.l.b16 %v716
    %v881 = vunpack.c.l.b16 %v717
    %v882 = vunpack.c.l.b16 %v718
    %v883 = vunpack.c.l.b16 %v719
    %v884 = vunpack.c.l.b16 %v720
    %v885 = vunpack.c.l.b16 %v721
    %v886 = vunpack.c.l.b16 %v722
    %v887 = vunpack.c.l.b16 %v723
    %v888 = vunpack.c.l.b16 %v724
    %v889 = vunpack.c.l.b16 %v725
    %v890 = vunpack.c.l.b16 %v726
    %v891 = vunpack.c.l.b16 %v727
    %v892 = vunpack.c.l.b16 %v728
    %v893 = vunpack.c.l.b16 %v729
    %v894 = vunpack.c.l.b16 %v730
    %v895 = vunpack.c.l.b16 %v731
    %v896 = vunpack.c.l.b16 %v732
    %v897 = vunpack.c.l.b16 %v733
    %v898 = vunpack.c.l.b16 %v734
    %v899 = vunpack.c.l.b16 %v735
    %v900 = vunpack.c.l.b16 %v736
    %v901 = vunpack.c.l.b16 %v737
    %v902 = vunpack.c.l.b16 %v738
    %v903 = vunpack.c.l.b16 %v739
    %v904 = vunpack.c.l.b16 %v740
    %v905 = vunpack.c.l.b16 %v741
    %v906 = vunpack.c.l.b16 %v742
    %v907 = vunpack.c.l.b16 %v743
    %v908 = vunpack.c.l.b16 %v744
    %v909 = vunpack.c.l.b16 %v745
    %v910 = vunpack.c.l.b16 %v746
    %v911 = vunpack.c.l.b16 %v747
    %v912 = vunpack.c.l.b16 %v748
    %v913 = vunpack.c.l.b16 %v749
    %v914 = vunpack.c.l.b16 %v750
    %v915 = vunpack.c.l.b16 %v751
    %v916 = vunpack.c.l.b16 %v752
    %v917 = vunpack.c.l.b16 %v753
    %v918 = vunpack.c.l.b16 %v754
    %v919 = vunpack.c.l.b16 %v755
    %v920 = vunpack.c.l.b16 %v756
    %v921 = vunpack.c.l.b16 %v757
    %v922 = vunpack.c.l.b16 %v758
    %v923 = vunpack.c.l.b16 %v759
    %v924 = vunpack.c.l.b16 %v760
    %v925 = vunpack.c.l.b16 %v761
    %v926 = vunpack.c.l.b16 %v762
    %v927 = vunpack.c.l.b16 %v763
    %v928 = vunpack.c.l.b16 %v764
    %v929 = vunpack.c.l.b16 %v765
    %v930 = vunpack.c.l.b16 %v766
    %v931 = vunpack.c.l.b16 %v767
    %v932 = vunpack.c.l.b16 %v768
    %v933 = vunpack.c.l.b16 %v769
    %v934 = vunpack.c.l.b16 %v770
    %v935 = vunpack.c.l.b16 %v771
    %v936 = vunpack.c.l.b16 %v772
    %v937 = vunpack.c.l.b16 %v773
    %v938 = vpack.c.b16 %v859, %v858
    %v939 = vpack.c.b16 %v861, %v860
    %v940 = vpack.c.b16 %v863, %v862
    %v941 = vpack.c.b16 %v865, %v864
    %v942 = vpack.c.b16 %v867, %v866
    %v943 = vpack.c.b16 %v869, %v868
    %v944 = vpack.c.b16 %v871, %v870
    %v945 = vpack.c.b16 %v873, %v872
    %v946 = vpack.c.b16 %v875, %v874
    %v947 = vpack.c.b16 %v877, %v876
    %v948 = vpack.c.b16 %v879, %v878
    %v949 = vpack.c.b16 %v881, %v880
    %v950 = vpack.c.b16 %v883, %v882
    %v951 = vpack.c.b16 %v885, %v884
    %v952 = vpack.c.b16 %v887, %v886
    %v953 = vpack.c.b16 %v889, %v888
    %v954 = vpack.c.b16 %v891, %v890
    %v955 = vpack.c.b16 %v893, %v892
    %v956 = vpack.c.b16 %v895, %v894
    %v957 = vpack.c.b16 %v897, %v896
    %v958 = vpack.c.b16 %v899, %v898
    %v959 = vpack.c.b16 %v901, %v900
    %v960 = vpack.c.b16 %v903, %v902
    %v961 = vpack.c.b16 %v905, %v904
    %v962 = vpack.c.b16 %v907, %v906
    %v963 = vpack.c.b16 %v909, %v908
    %v964 = vpack.c.b16 %v911, %v910
    %v965 = vpack.c.b16 %v913, %v912
    %v966 = vpack.c.b16 %v915, %v914
    %v967 = vpack.c.b16 %v917, %v916
    %v968 = vpack.c.b16 %v919, %v918
    %v969 = vpack.c.b16 %v921, %v920
    %v970 = vpack.c.b16 %v923, %v922
    %v971 = vpack.c.b16 %v925, %v924
    %v972 = vpack.c.b16 %v927, %v926
    %v973 = vpack.c.b16 %v929, %v928
    %v974 = vpack.c.b16 %v931, %v930
    %v975 = vpack.c.b16 %v933, %v932
    %v976 = vpack.c.b16 %v935, %v934
    %v977 = vpack.c.b16 %v937, %v936
    %1018 = vmatpush.bf16.msra.mxu0 %v945
    %1019 = vmatpush.bf16.msra.mxu0 %v944
    %1020 = vmatpush.bf16.msra.mxu0 %v943
    %1021 = vmatpush.bf16.msra.mxu0 %v942
    %1022 = vmatpush.bf16.msra.mxu0 %v941
    %1023 = vmatpush.bf16.msra.mxu0 %v940
    %1024 = vmatpush.bf16.msra.mxu0 %v939
    %1025 = vmatpush.bf16.msra.mxu0 %v938
    %1026 = vmatmul.bf16.gmra.mxu0 %v486
    %v1027 = vpop.f32.mrf.mxu0
    %v1028 = vadd.f32 %v776, %v1027
    %v1029 = vpop.f32.mrf.mxu0
    %v1030 = vadd.f32 %v776, %v1029
    %1031 = vmatmul.bf16.gmra.mxu0 %v487
    %v1032 = vpop.f32.mrf.mxu0
    %v1033 = vadd.f32 %v776, %v1032
    %v1034 = vpop.f32.mrf.mxu0
    %v1035 = vadd.f32 %v776, %v1034
    %1036 = vmatmul.bf16.gmra.mxu0 %v488
    %v1037 = vpop.f32.mrf.mxu0
    %v1038 = vadd.f32 %v776, %v1037
    %v1039 = vpop.f32.mrf.mxu0
    %v1040 = vadd.f32 %v776, %v1039
    %1041 = vmatmul.bf16.gmra.mxu0 %v489
    %v1042 = vpop.f32.mrf.mxu0
    %v1043 = vadd.f32 %v776, %v1042
    %v1044 = vpop.f32.mrf.mxu0
    %v1045 = vadd.f32 %v776, %v1044
    %1046 = vmatmul.bf16.gmra.mxu0 %v490
    %v1047 = vpop.f32.mrf.mxu0
    %v1048 = vadd.f32 %v776, %v1047
    %v1049 = vpop.f32.mrf.mxu0
    %v1050 = vadd.f32 %v776, %v1049
    %1051 = vmatmul.bf16.gmra.mxu0 %v491
    %v1052 = vpop.f32.mrf.mxu0
    %v1053 = vadd.f32 %v776, %v1052
    %v1054 = vpop.f32.mrf.mxu0
    %v1055 = vadd.f32 %v776, %v1054
    %1056 = vmatmul.bf16.gmra.mxu0 %v492
    %v1057 = vpop.f32.mrf.mxu0
    %v1058 = vadd.f32 %v776, %v1057
    %v1059 = vpop.f32.mrf.mxu0
    %v1060 = vadd.f32 %v776, %v1059
    %1061 = vmatmul.bf16.gmra.mxu0 %v493
    %v1062 = vpop.f32.mrf.mxu0
    %v1063 = vadd.f32 %v776, %v1062
    %v1064 = vpop.f32.mrf.mxu0
    %v1065 = vadd.f32 %v776, %v1064
    %1066 = vdwg.mxu0
    %1067 = vmatpush.bf16.msra.mxu0 %v953
    %1068 = vmatpush.bf16.msra.mxu0 %v952
    %1069 = vmatpush.bf16.msra.mxu0 %v951
    %1070 = vmatpush.bf16.msra.mxu0 %v950
    %1071 = vmatpush.bf16.msra.mxu0 %v949
    %1072 = vmatpush.bf16.msra.mxu0 %v948
    %1073 = vmatpush.bf16.msra.mxu0 %v947
    %1074 = vmatpush.bf16.msra.mxu0 %v946
    %1075 = vmatmul.bf16.gmra.mxu0 %v534
    %v1076 = vpop.f32.mrf.mxu0
    %v1077 = vadd.f32 %v1028, %v1076
    %v1078 = vpop.f32.mrf.mxu0
    %v1079 = vadd.f32 %v1030, %v1078
    %1080 = vmatmul.bf16.gmra.mxu0 %v535
    %v1081 = vpop.f32.mrf.mxu0
    %v1082 = vadd.f32 %v1033, %v1081
    %v1083 = vpop.f32.mrf.mxu0
    %v1084 = vadd.f32 %v1035, %v1083
    %1085 = vmatmul.bf16.gmra.mxu0 %v536
    %v1086 = vpop.f32.mrf.mxu0
    %v1087 = vadd.f32 %v1038, %v1086
    %v1088 = vpop.f32.mrf.mxu0
    %v1089 = vadd.f32 %v1040, %v1088
    %1090 = vmatmul.bf16.gmra.mxu0 %v537
    %v1091 = vpop.f32.mrf.mxu0
    %v1092 = vadd.f32 %v1043, %v1091
    %v1093 = vpop.f32.mrf.mxu0
    %v1094 = vadd.f32 %v1045, %v1093
    %1095 = vmatmul.bf16.gmra.mxu0 %v538
    %v1096 = vpop.f32.mrf.mxu0
    %v1097 = vadd.f32 %v1048, %v1096
    %v1098 = vpop.f32.mrf.mxu0
    %v1099 = vadd.f32 %v1050, %v1098
    %1100 = vmatmul.bf16.gmra.mxu0 %v539
    %v1101 = vpop.f32.mrf.mxu0
    %v1102 = vadd.f32 %v1053, %v1101
    %v1103 = vpop.f32.mrf.mxu0
    %v1104 = vadd.f32 %v1055, %v1103
    %1105 = vmatmul.bf16.gmra.mxu0 %v540
    %v1106 = vpop.f32.mrf.mxu0
    %v1107 = vadd.f32 %v1058, %v1106
    %v1108 = vpop.f32.mrf.mxu0
    %v1109 = vadd.f32 %v1060, %v1108
    %1110 = vmatmul.bf16.gmra.mxu0 %v541
    %v1111 = vpop.f32.mrf.mxu0
    %v1112 = vadd.f32 %v1063, %v1111
    %v1113 = vpop.f32.mrf.mxu0
    %v1114 = vadd.f32 %v1065, %v1113
    %1115 = vdwg.mxu0
    %1116 = vmatpush.bf16.msra.mxu0 %v961
    %1117 = vmatpush.bf16.msra.mxu0 %v960
    %1118 = vmatpush.bf16.msra.mxu0 %v959
    %1119 = vmatpush.bf16.msra.mxu0 %v958
    %1120 = vmatpush.bf16.msra.mxu0 %v957
    %1121 = vmatpush.bf16.msra.mxu0 %v956
    %1122 = vmatpush.bf16.msra.mxu0 %v955
    %1123 = vmatpush.bf16.msra.mxu0 %v954
    %1124 = vmatmul.bf16.gmra.mxu0 %v582
    %v1125 = vpop.f32.mrf.mxu0
    %v1126 = vadd.f32 %v1077, %v1125
    %v1127 = vpop.f32.mrf.mxu0
    %v1128 = vadd.f32 %v1079, %v1127
    %1129 = vmatmul.bf16.gmra.mxu0 %v583
    %v1130 = vpop.f32.mrf.mxu0
    %v1131 = vadd.f32 %v1082, %v1130
    %v1132 = vpop.f32.mrf.mxu0
    %v1133 = vadd.f32 %v1084, %v1132
    %1134 = vmatmul.bf16.gmra.mxu0 %v584
    %v1135 = vpop.f32.mrf.mxu0
    %v1136 = vadd.f32 %v1087, %v1135
    %v1137 = vpop.f32.mrf.mxu0
    %v1138 = vadd.f32 %v1089, %v1137
    %1139 = vmatmul.bf16.gmra.mxu0 %v585
    %v1140 = vpop.f32.mrf.mxu0
    %v1141 = vadd.f32 %v1092, %v1140
    %v1142 = vpop.f32.mrf.mxu0
    %v1143 = vadd.f32 %v1094, %v1142
    %1144 = vmatmul.bf16.gmra.mxu0 %v586
    %v1145 = vpop.f32.mrf.mxu0
    %v1146 = vadd.f32 %v1097, %v1145
    %v1147 = vpop.f32.mrf.mxu0
    %v1148 = vadd.f32 %v1099, %v1147
    %1149 = vmatmul.bf16.gmra.mxu0 %v587
    %v1150 = vpop.f32.mrf.mxu0
    %v1151 = vadd.f32 %v1102, %v1150
    %v1152 = vpop.f32.mrf.mxu0
    %v1153 = vadd.f32 %v1104, %v1152
    %1154 = vmatmul.bf16.gmra.mxu0 %v588
    %v1155 = vpop.f32.mrf.mxu0
    %v1156 = vadd.f32 %v1107, %v1155
    %v1157 = vpop.f32.mrf.mxu0
    %v1158 = vadd.f32 %v1109, %v1157
    %1159 = vmatmul.bf16.gmra.mxu0 %v589
    %v1160 = vpop.f32.mrf.mxu0
    %v1161 = vadd.f32 %v1112, %v1160
    %v1162 = vpop.f32.mrf.mxu0
    %v1163 = vadd.f32 %v1114, %v1162
    %1164 = vdwg.mxu0
    %1165 = vmatpush.bf16.msra.mxu0 %v969
    %1166 = vmatpush.bf16.msra.mxu0 %v968
    %1167 = vmatpush.bf16.msra.mxu0 %v967
    %1168 = vmatpush.bf16.msra.mxu0 %v966
    %1169 = vmatpush.bf16.msra.mxu0 %v965
    %1170 = vmatpush.bf16.msra.mxu0 %v964
    %1171 = vmatpush.bf16.msra.mxu0 %v963
    %1172 = vmatpush.bf16.msra.mxu0 %v962
    %1173 = vmatmul.bf16.gmra.mxu0 %v630
    %v1174 = vpop.f32.mrf.mxu0
    %v1175 = vadd.f32 %v1126, %v1174
    %v1176 = vpop.f32.mrf.mxu0
    %v1177 = vadd.f32 %v1128, %v1176
    %1178 = vmatmul.bf16.gmra.mxu0 %v631
    %v1179 = vpop.f32.mrf.mxu0
    %v1180 = vadd.f32 %v1131, %v1179
    %v1181 = vpop.f32.mrf.mxu0
    %v1182 = vadd.f32 %v1133, %v1181
    %1183 = vmatmul.bf16.gmra.mxu0 %v632
    %v1184 = vpop.f32.mrf.mxu0
    %v1185 = vadd.f32 %v1136, %v1184
    %v1186 = vpop.f32.mrf.mxu0
    %v1187 = vadd.f32 %v1138, %v1186
    %1188 = vmatmul.bf16.gmra.mxu0 %v633
    %v1189 = vpop.f32.mrf.mxu0
    %v1190 = vadd.f32 %v1141, %v1189
    %v1191 = vpop.f32.mrf.mxu0
    %v1192 = vadd.f32 %v1143, %v1191
    %1193 = vmatmul.bf16.gmra.mxu0 %v634
    %v1194 = vpop.f32.mrf.mxu0
    %v1195 = vadd.f32 %v1146, %v1194
    %v1196 = vpop.f32.mrf.mxu0
    %v1197 = vadd.f32 %v1148, %v1196
    %1198 = vmatmul.bf16.gmra.mxu0 %v635
    %v1199 = vpop.f32.mrf.mxu0
    %v1200 = vadd.f32 %v1151, %v1199
    %v1201 = vpop.f32.mrf.mxu0
    %v1202 = vadd.f32 %v1153, %v1201
    %1203 = vmatmul.bf16.gmra.mxu0 %v636
    %v1204 = vpop.f32.mrf.mxu0
    %v1205 = vadd.f32 %v1156, %v1204
    %v1206 = vpop.f32.mrf.mxu0
    %v1207 = vadd.f32 %v1158, %v1206
    %1208 = vmatmul.bf16.gmra.mxu0 %v637
    %v1209 = vpop.f32.mrf.mxu0
    %v1210 = vadd.f32 %v1161, %v1209
    %v1211 = vpop.f32.mrf.mxu0
    %v1212 = vadd.f32 %v1163, %v1211
    %1213 = vdwg.mxu0
    %1214 = vmatpush.bf16.msra.mxu0 %v977
    %1215 = vmatpush.bf16.msra.mxu0 %v976
    %1216 = vmatpush.bf16.msra.mxu0 %v975
    %1217 = vmatpush.bf16.msra.mxu0 %v974
    %1218 = vmatpush.bf16.msra.mxu0 %v973
    %1219 = vmatpush.bf16.msra.mxu0 %v972
    %1220 = vmatpush.bf16.msra.mxu0 %v971
    %1221 = vmatpush.bf16.msra.mxu0 %v970
    %1222 = vmatmul.bf16.gmra.mxu0 %v678
    %v1223 = vpop.f32.mrf.mxu0
    %v1224 = vadd.f32 %v1175, %v1223
    %v1225 = vpop.f32.mrf.mxu0
    %v1226 = vadd.f32 %v1177, %v1225
    %1227 = vmatmul.bf16.gmra.mxu0 %v679
    %v1228 = vpop.f32.mrf.mxu0
    %v1229 = vadd.f32 %v1180, %v1228
    %v1230 = vpop.f32.mrf.mxu0
    %v1231 = vadd.f32 %v1182, %v1230
    %1232 = vmatmul.bf16.gmra.mxu0 %v680
    %v1233 = vpop.f32.mrf.mxu0
    %v1234 = vadd.f32 %v1185, %v1233
    %v1235 = vpop.f32.mrf.mxu0
    %v1236 = vadd.f32 %v1187, %v1235
    %1237 = vmatmul.bf16.gmra.mxu0 %v681
    %v1238 = vpop.f32.mrf.mxu0
    %v1239 = vadd.f32 %v1190, %v1238
    %v1240 = vpop.f32.mrf.mxu0
    %v1241 = vadd.f32 %v1192, %v1240
    %1242 = vmatmul.bf16.gmra.mxu0 %v682
    %v1243 = vpop.f32.mrf.mxu0
    %v1244 = vadd.f32 %v1195, %v1243
    %v1245 = vpop.f32.mrf.mxu0
    %v1246 = vadd.f32 %v1197, %v1245
    %1247 = vmatmul.bf16.gmra.mxu0 %v683
    %v1248 = vpop.f32.mrf.mxu0
    %v1249 = vadd.f32 %v1200, %v1248
    %v1250 = vpop.f32.mrf.mxu0
    %v1251 = vadd.f32 %v1202, %v1250
    %1252 = vmatmul.bf16.gmra.mxu0 %v684
    %v1253 = vpop.f32.mrf.mxu0
    %v1254 = vadd.f32 %v1205, %v1253
    %v1255 = vpop.f32.mrf.mxu0
    %v1256 = vadd.f32 %v1207, %v1255
    %1257 = vmatmul.bf16.gmra.mxu0 %v685
    %v1258 = vpop.f32.mrf.mxu0
    %v1259 = vadd.f32 %v1210, %v1258
    %v1260 = vpop.f32.mrf.mxu0
    %v1261 = vadd.f32 %v1212, %v1260
    %1262 = vdwg.mxu0
    %v1263 = vmax.f32 %v1224, 0.0
    %v1264 = vmax.f32 %v1226, 0.0
    %v1265 = vmax.f32 %v1229, 0.0
    %v1266 = vmax.f32 %v1231, 0.0
    %v1267 = vmax.f32 %v1234, 0.0
    %v1268 = vmax.f32 %v1236, 0.0
    %v1269 = vmax.f32 %v1239, 0.0
    %v1270 = vmax.f32 %v1241, 0.0
    %v1271 = vmax.f32 %v1244, 0.0
    %v1272 = vmax.f32 %v1246, 0.0
    %v1273 = vmax.f32 %v1249, 0.0
    %v1274 = vmax.f32 %v1251, 0.0
    %v1275 = vmax.f32 %v1254, 0.0
    %v1276 = vmax.f32 %v1256, 0.0
    %v1277 = vmax.f32 %v1259, 0.0
    %v1278 = vmax.f32 %v1261, 0.0
    %v1279 = vld [vmem:[#allocation7] sm:$0xff]
    %v1280 = vld [vmem:[#allocation7 + $0x8] sm:$0xff]
    %v1281 = vadd.f32 %v1263, %v1279
    %v1282 = vadd.f32 %v1264, %v1280
    %v1283 = vadd.f32 %v1265, %v1279
    %v1284 = vadd.f32 %v1266, %v1280
    %v1285 = vadd.f32 %v1267, %v1279
    %v1286 = vadd.f32 %v1268, %v1280
    %v1287 = vadd.f32 %v1269, %v1279
    %v1288 = vadd.f32 %v1270, %v1280
    %v1289 = vadd.f32 %v1271, %v1279
    %v1290 = vadd.f32 %v1272, %v1280
    %v1291 = vadd.f32 %v1273, %v1279
    %v1292 = vadd.f32 %v1274, %v1280
    %v1293 = vadd.f32 %v1275, %v1279
    %v1294 = vadd.f32 %v1276, %v1280
    %v1295 = vadd.f32 %v1277, %v1279
    %v1296 = vadd.f32 %v1278, %v1280
    %v1297 = vmax.f32 %v1281, %v1282
    %v1298 = vrot.slane %v1297, 4
    %v1299 = vmax.f32 %v1297, %v1298
    %v1300 = vrot.slane %v1299, 2
    %v1301 = vmax.f32 %v1299, %v1300
    %v1302 = vrot.slane %v1301, 1
    %v1303 = vmax.f32 %v1301, %v1302
    %v1304 = vmax.f32 %v1283, %v1284
    %v1305 = vrot.slane %v1304, 4
    %v1306 = vmax.f32 %v1304, %v1305
    %v1307 = vrot.slane %v1306, 2
    %v1308 = vmax.f32 %v1306, %v1307
    %v1309 = vrot.slane %v1308, 1
    %v1310 = vmax.f32 %v1308, %v1309
    %v1311 = vmax.f32 %v1285, %v1286
    %v1312 = vrot.slane %v1311, 4
    %v1313 = vmax.f32 %v1311, %v1312
    %v1314 = vrot.slane %v1313, 2
    %v1315 = vmax.f32 %v1313, %v1314
    %v1316 = vrot.slane %v1315, 1
    %v1317 = vmax.f32 %v1315, %v1316
    %v1318 = vmax.f32 %v1287, %v1288
    %v1319 = vrot.slane %v1318, 4
    %v1320 = vmax.f32 %v1318, %v1319
    %v1321 = vrot.slane %v1320, 2
    %v1322 = vmax.f32 %v1320, %v1321
    %v1323 = vrot.slane %v1322, 1
    %v1324 = vmax.f32 %v1322, %v1323
    %v1325 = vmax.f32 %v1289, %v1290
    %v1326 = vrot.slane %v1325, 4
    %v1327 = vmax.f32 %v1325, %v1326
    %v1328 = vrot.slane %v1327, 2
    %v1329 = vmax.f32 %v1327, %v1328
    %v1330 = vrot.slane %v1329, 1
    %v1331 = vmax.f32 %v1329, %v1330
    %v1332 = vmax.f32 %v1291, %v1292
    %v1333 = vrot.slane %v1332, 4
    %v1334 = vmax.f32 %v1332, %v1333
    %v1335 = vrot.slane %v1334, 2
    %v1336 = vmax.f32 %v1334, %v1335
    %v1337 = vrot.slane %v1336, 1
    %v1338 = vmax.f32 %v1336, %v1337
    %v1339 = vmax.f32 %v1293, %v1294
    %v1340 = vrot.slane %v1339, 4
    %v1341 = vmax.f32 %v1339, %v1340
    %v1342 = vrot.slane %v1341, 2
    %v1343 = vmax.f32 %v1341, %v1342
    %v1344 = vrot.slane %v1343, 1
    %v1345 = vmax.f32 %v1343, %v1344
    %v1346 = vmax.f32 %v1295, %v1296
    %v1347 = vrot.slane %v1346, 4
    %v1348 = vmax.f32 %v1346, %v1347
    %v1349 = vrot.slane %v1348, 2
    %v1350 = vmax.f32 %v1348, %v1349
    %v1351 = vrot.slane %v1350, 1
    %v1352 = vmax.f32 %v1350, %v1351
    %v1353 = vmax.f32 %v1303, 0.0
    %v1354 = vmax.f32 %v1310, 0.0
    %v1355 = vmax.f32 %v1317, 0.0
    %v1356 = vmax.f32 %v1324, 0.0
    %v1357 = vmax.f32 %v1331, 0.0
    %v1358 = vmax.f32 %v1338, 0.0
    %v1359 = vmax.f32 %v1345, 0.0
    %v1360 = vmax.f32 %v1352, 0.0
    %v1361 = vpack.c.bf16 %v1353, %v1353
    %v1362 = vpack.c.bf16 %v1354, %v1354
    %v1363 = vpack.c.bf16 %v1355, %v1355
    %v1364 = vpack.c.bf16 %v1356, %v1356
    %v1365 = vpack.c.bf16 %v1357, %v1357
    %v1366 = vpack.c.bf16 %v1358, %v1358
    %v1367 = vpack.c.bf16 %v1359, %v1359
    %v1368 = vpack.c.bf16 %v1360, %v1360
    %v1369 = vld [vmem:[#allocation8] sm:$0xf]
    %v1370 = vld [vmem:[#allocation8 + $0x4] sm:$0xf]
    %v1371 = vld [vmem:[#allocation8 + $0x8] sm:$0xf]
    %v1372 = vld [vmem:[#allocation8 + $0xc] sm:$0xf]
    %v1373 = vld [vmem:[#allocation8 + $0x10] sm:$0xf]
    %v1374 = vld [vmem:[#allocation8 + $0x14] sm:$0xf]
    %v1375 = vld [vmem:[#allocation8 + $0x18] sm:$0xf]
    %v1376 = vld [vmem:[#allocation8 + $0x1c] sm:$0xf]
    %v1377 = vld [vmem:[#allocation8 + $0x20] sm:$0xf]
    %v1378 = vld [vmem:[#allocation8 + $0x24] sm:$0xf]
    %v1379 = vld [vmem:[#allocation8 + $0x28] sm:$0xf]
    %v1380 = vld [vmem:[#allocation8 + $0x2c] sm:$0xf]
    %v1381 = vld [vmem:[#allocation8 + $0x30] sm:$0xf]
    %v1382 = vld [vmem:[#allocation8 + $0x34] sm:$0xf]
    %v1383 = vld [vmem:[#allocation8 + $0x38] sm:$0xf]
    %v1384 = vld [vmem:[#allocation8 + $0x3c] sm:$0xf]
    %v1385 = vld [vmem:[%s5] sm:$0x1]
    %v1387 = vperm.slane %v1385, 0
    %v1397 = vunpack.c.l.b16 %v1361
    %v1398 = vunpack.c.l.b16 %v1362
    %v1399 = vunpack.c.l.b16 %v1363
    %v1400 = vunpack.c.l.b16 %v1364
    %v1401 = vunpack.c.l.b16 %v1365
    %v1402 = vunpack.c.l.b16 %v1366
    %v1403 = vunpack.c.l.b16 %v1367
    %v1404 = vunpack.c.l.b16 %v1368
    %vm1405 = vcmask 1041409
    %v1406 = vsel %vm1405, %v1398, %v1397
    %vm1407 = vcmask 1042434
    %v1408 = vsel %vm1407, %v1399, %v1406
    %vm1409 = vcmask 1043459
    %v1410 = vsel %vm1409, %v1400, %v1408
    %vm1411 = vcmask 1044484
    %v1412 = vsel %vm1411, %v1401, %v1410
    %vm1413 = vcmask 1045509
    %v1414 = vsel %vm1413, %v1402, %v1412
    %vm1415 = vcmask 1046534
    %v1416 = vsel %vm1415, %v1403, %v1414
    %vm1417 = vcmask 1047559
    %v1418 = vsel %vm1417, %v1404, %v1416
    %v1419 = vpack.c.b16 %v1418, %v1418
    %v1437 = vunpack.c.l.b16 %v1369
    %v1438 = vunpack.c.l.b16 %v1370
    %v1439 = vunpack.c.l.b16 %v1371
    %v1440 = vunpack.c.l.b16 %v1372
    %v1441 = vunpack.c.l.b16 %v1373
    %v1442 = vunpack.c.l.b16 %v1374
    %v1443 = vunpack.c.l.b16 %v1375
    %v1444 = vunpack.c.l.b16 %v1376
    %v1445 = vunpack.c.l.b16 %v1377
    %v1446 = vunpack.c.l.b16 %v1378
    %v1447 = vunpack.c.l.b16 %v1379
    %v1448 = vunpack.c.l.b16 %v1380
    %v1449 = vunpack.c.l.b16 %v1381
    %v1450 = vunpack.c.l.b16 %v1382
    %v1451 = vunpack.c.l.b16 %v1383
    %v1452 = vunpack.c.l.b16 %v1384
    %v1453 = vpack.c.b16 %v1438, %v1437
    %v1454 = vpack.c.b16 %v1440, %v1439
    %v1455 = vpack.c.b16 %v1442, %v1441
    %v1456 = vpack.c.b16 %v1444, %v1443
    %v1457 = vpack.c.b16 %v1446, %v1445
    %v1458 = vpack.c.b16 %v1448, %v1447
    %v1459 = vpack.c.b16 %v1450, %v1449
    %v1460 = vpack.c.b16 %v1452, %v1451
    %1469 = vmatpush.bf16.msra.mxu0 %v1460
    %1470 = vmatpush.bf16.msra.mxu0 %v1459
    %1471 = vmatpush.bf16.msra.mxu0 %v1458
    %1472 = vmatpush.bf16.msra.mxu0 %v1457
    %1473 = vmatpush.bf16.msra.mxu0 %v1456
    %1474 = vmatpush.bf16.msra.mxu0 %v1455
    %1475 = vmatpush.bf16.msra.mxu0 %v1454
    %1476 = vmatpush.bf16.msra.mxu0 %v1453
    %1477 = vmatmul.bf16.gmra.mxu0 %v1419
    %v1478 = vpop.f32.mrf.mxu0
    %v1479 = vadd.f32 %v1387, %v1478
    %v1480 = vpop.f32.mrf.mxu0
    %1481 = vdwg.mxu0
    %1482 = vst [vmem:[#allocation10] sm:$0xff] %v1479
    // Predicated region
    $region42: #{tpu_custom_call.1} parent=1 // pred_check
      _
    $region43: #{tpu_custom_call.1} parent=1 // pred_check_branch
      %1484 = sbr.rel (0) target = $region45
    $region44: #{tpu_custom_call.1} parent=1 // pred_region
      %1486 = vsyncadd [#allocation4], 0
      %s1488 = sshll.u32 [#allocation10], 4
      %s1489 = int_to_ptr.vmem [resolvable:$true] %s1488
      %s1490 = sshll.u32 %s6, 4
      %s1491 = int_to_ptr.hbm [resolvable:$true] %s1490
      %1493 = dma.vmem_to_hbm [thread:$0]  %s1489, 128, %s1491, [#allocation4]
    $region45: #{tpu_custom_call.1} parent=1 // pred_fallthru
      _
    // Predicated region
    $region46: #{tpu_custom_call.1} parent=1 // pred_check
      _
    $region47: #{tpu_custom_call.1} parent=1 // pred_check_branch
      %1495 = sbr.rel (0) target = $region49
    $region48: #{tpu_custom_call.1} parent=1 // pred_region
      %1497 = dma.done [#allocation4], 128
    $region49: #{tpu_custom_call.1} parent=1 // pred_fallthru
      _
    %1498 = vsyncpa [#allocation3], 1
    %1499 = vsyncpa [#allocation6], 1
    %1500 = vsyncpa [#allocation9], 1
    %1501 = vsyncpa [#allocation4], 1

</llo_original>
